<compile_context>
chip_gen: v5e
topology: v5e:2x2
jax: 0.10.0
libtpu: 0.0.40
codegen_flags: <defaults>
</compile_context>

<pallas_src>
import functools

import jax
import jax.numpy as jnp
from jax.experimental import pallas as pl
from jax.experimental.pallas import tpu as pltpu


def _fill_kernel(c_ref, o_ref):
    # Degenerate clamp (min >= max): every output element equals the clamp value.
    o_ref[...] = jnp.full(o_ref.shape, c_ref[0], o_ref.dtype)


def _convt_clamp_kernel(b_ref, xr_ref, sblk_ref, sl_ref, o_ref, *, min_value, max_value):
    # b_ref:    (1,) SMEM bias scalar
    # xr_ref:   (H, N*W)          input with batch folded into lanes
    # sblk_ref: (N*W, N*W_out)    block-diagonal width scatter, weight pre-folded
    # sl_ref:   (H, H_out)        height scatter
    # o_ref:    (H_out, N*W_out)  lane-dense output slab
    xs = jnp.dot(xr_ref[...], sblk_ref[...],
                 preferred_element_type=jnp.float32)                 # (H, N*W_out)
    # S_h^T @ xs without materializing a transpose: contract dim 0 with dim 0.
    y = jax.lax.dot_general(sl_ref[...], xs, (((0,), (0,)), ((), ())),
                            preferred_element_type=jnp.float32)      # (H_out, N*W_out)
    v = y + b_ref[0]
    v = jnp.minimum(jnp.maximum(v, min_value), max_value)            # clamp_min, clamp_max
    o_ref[...] = v.astype(o_ref.dtype)


def conv_transpose_clamp(x, weight, bias, *, min_value=-6.01, max_value=-6.01,
                         stride=3, padding=3):
    n, c, h, w_in = x.shape
    assert c == 1, "kernel specialized to C_in = C_out = 1"
    h_out = (h - 1) * stride - 2 * padding + 1
    w_out = (w_in - 1) * stride - 2 * padding + 1

    if min_value >= max_value:
        # clamp_min(min) then clamp_max(max) with min >= max pins every finite
        # element to max_value: skip the conv-transpose entirely.
        fill = jnp.asarray([max_value], dtype=jnp.float32)
        out = pl.pallas_call(
            _fill_kernel,
            out_shape=jax.ShapeDtypeStruct((n, h_out * w_out), jnp.float32),
            in_specs=[pl.BlockSpec(memory_space=pltpu.MemorySpace.SMEM)],
            out_specs=pl.BlockSpec(memory_space=pltpu.MemorySpace.VMEM),
        )(fill)
        return out.reshape(n, 1, h_out, w_out)

    # ---- general path: real conv-transpose + clamp (single kernel invocation) ----
    w_scalar = weight.reshape(()).astype(jnp.float32)
    b_scalar = bias.reshape(1).astype(jnp.float32)

    # Width scatter with the scalar weight folded in, then block-diag over batch.
    s_w = (jnp.arange(w_out)[None, :] ==
           (jnp.arange(w_in)[:, None] * stride - padding)).astype(jnp.float32) * w_scalar
    s_blk = jnp.kron(jnp.eye(n, dtype=jnp.float32), s_w)            # (N*W, N*W_out)

    # Height scatter (unweighted — weight already folded once).
    s_l = (jnp.arange(h_out)[None, :] ==
           (jnp.arange(h)[:, None] * stride - padding)).astype(jnp.float32)   # (H, H_out)

    # (N, H, W) -> (H, N*W): batch folded into the lane axis (host-side glue).
    xr = jnp.transpose(x.reshape(n, h, w_in).astype(jnp.float32),
                       (1, 0, 2)).reshape(h, n * w_in)

    kernel = functools.partial(_convt_clamp_kernel,
                               min_value=min_value, max_value=max_value)
    out = pl.pallas_call(
        kernel,
        out_shape=jax.ShapeDtypeStruct((h_out, n * w_out), jnp.float32),
        in_specs=[
            pl.BlockSpec(memory_space=pltpu.MemorySpace.SMEM),   # bias scalar
            pl.BlockSpec(memory_space=pltpu.MemorySpace.VMEM),   # xr
            pl.BlockSpec(memory_space=pltpu.MemorySpace.VMEM),   # s_blk
            pl.BlockSpec(memory_space=pltpu.MemorySpace.VMEM),   # s_l
        ],
        out_specs=pl.BlockSpec(memory_space=pltpu.MemorySpace.VMEM),
    )(b_scalar, xr, s_blk, s_l)

    # (H_out, N*W_out) -> (N, 1, H_out, W_out)   (layout plumbing only)
    out = jnp.transpose(out.reshape(h_out, n, w_out), (1, 0, 2))
    return out.reshape(n, 1, h_out, w_out)


def _ref_forward(x, weight, bias, min_v, max_v, stride=3, padding=3):
    """Pure-JAX reference: strided scatter + bias, then clamp_min / clamp_max."""
    n, _, h, w_in = x.shape
    h_out = (h - 1) * stride - 2 * padding + 1
    w_out = (w_in - 1) * stride - 2 * padding + 1
    wv = weight.reshape(()).astype(jnp.float32)
    bv = bias.reshape(()).astype(jnp.float32)
    out = jnp.full((n, 1, h_out, w_out), bv, dtype=jnp.float32)
    in_idx = jnp.arange(h)
    oh = in_idx * stride - padding
    valid = (oh >= 0) & (oh < h_out)
    vi = in_idx[valid]
    vo = oh[valid]
    out = out.at[:, 0, vo[:, None], vo[None, :]].set(
        wv * x[:, 0, vi[:, None], vi[None, :]].astype(jnp.float32) + bv)
    out = jnp.minimum(jnp.maximum(out, min_v), max_v)
    return out


if __name__ == "__main__":
    key = jax.random.PRNGKey(0)
    kx, kw, kb = jax.random.split(key, 3)

    # Input matching the reference script: (6, 1, 20, 20)
    x = jax.random.normal(kx, (6, 1, 20, 20), dtype=jnp.float32)

    # ConvTranspose2d(1,1,1): weight (1,1,1,1), bias (1,); default init U(-1, 1).
    weight = jax.random.uniform(kw, (1, 1, 1, 1), minval=-1.0, maxval=1.0, dtype=jnp.float32)
    bias = jax.random.uniform(kb, (1,), minval=-1.0, maxval=1.0, dtype=jnp.float32)

    # Module config (min == max == -6.01): fast constant-fill path.
    out = conv_transpose_clamp(x, weight, bias, min_value=-6.01, max_value=-6.01)
    out = jax.block_until_ready(out)
    ref = _ref_forward(x, weight, bias, -6.01, -6.01)
    assert out.shape == (6, 1, 52, 52), out.shape
    assert jnp.allclose(out, ref, atol=1e-5, rtol=1e-5), "mismatch vs reference (degenerate clamp)"

    # Also exercise the general matmul path with a non-degenerate clamp.
    out2 = conv_transpose_clamp(x, weight, bias, min_value=-6.01, max_value=6.01)
    out2 = jax.block_until_ready(out2)
    ref2 = _ref_forward(x, weight, bias, -6.01, 6.01)
    assert jnp.allclose(out2, ref2, atol=1e-5, rtol=1e-5), "mismatch vs reference (general path)"

    print("KERNEL_OK")
</pallas_src>

<mosaic_0001>
module attributes {stable_mosaic.version = 11 : i64} {
  func.func @_fill_kernel(%arg0: memref<1xf32, #tpu.memory_space<smem>>, %arg1: memref<6x2704xf32, #tpu.memory_space<vmem>>) attributes {dimension_semantics = [], scalar_prefetch = 0 : i64, scratch_operands = 0 : i64, tpu.core_type = #tpu.core_type<tc>} {
    %c0 = arith.constant 0 : index
    %0 = memref.load %arg0[%c0] : memref<1xf32, #tpu.memory_space<smem>>
    %1 = vector.broadcast %0 : f32 to vector<6x2704xf32>
    %c0_0 = arith.constant 0 : index
    %c0_1 = arith.constant 0 : index
    %2 = vector.load %arg1[%c0_0, %c0_1] : memref<6x2704xf32, #tpu.memory_space<vmem>>, vector<6x2704xf32>
    tpu.vector_store %arg1[%c0_0, %c0_1], %1 {strides = array<i32>} : memref<6x2704xf32, #tpu.memory_space<vmem>>, vector<6x2704xf32>,
    return
  }
}

</mosaic_0001>

<llo_original>
// kernel: tpu_custom_call.1
$region0: #{tpu_custom_call.1}
  #allocation0 [shape = 'u32[]', space=smem, size = 0x4, offset = 0x4, fixed_abs, tag = 'smem constant byte address 0x4 - core index']
  #allocation1 [shape = 'u32[72,128]{1,0:T(1,128)}', space=vmem, size = 0x9000, scoped, tag = 'internal scratch']
  #allocation2 [shape = 'f32[1]{0:T(128)S(6)}', space=smem, size = 0x200, scoped, tag = 'scoped memory for tpu_custom_call.1']
  %s0 = inlined_call_operand.<no memory space> [shape: f32[1], index: 0, kind: input, shape index: {}]
  %s1 = inlined_call_operand.hbm [shape: f32[6,2704], index: 1, kind: output, shape index: {}]
  %s2 = sld [smem:[#allocation0]]
  $region14: #{tpu_custom_call.1} parent=0
    _
  %s4 = ssub.s32 1, %s2
  %s5 = scalar_select 0, %s4, %s2
  %6 = sst [smem:[#allocation2]] %s0
  $region1: #{tpu_custom_call.1} parent=0
    #allocation3 [shape = 'u8[90112]{0}', space=vmem, size = 0x16000, scoped, tag = 'output window, operand 0, single buffered']
    #allocation4 [shape = 's32[1]{0}', space=sflag, size = 0x4, scoped, tag = 'scoped memory for tpu_custom_call.1']
    %7 = vsyncpa [#allocation4], 0
    // Predicated region
    $region2: #{tpu_custom_call.1} parent=1 // pred_check
      _
    $region3: #{tpu_custom_call.1} parent=1 // pred_check_branch
      %9 = sbr.rel (0) target = $region5
    $region4: #{tpu_custom_call.1} parent=1 // pred_region
      _
    $region5: #{tpu_custom_call.1} parent=1 // pred_fallthru
      _
    %s10 = sld [smem:[#allocation2]]
    %v11 = vstv %s10
    %12 = vst [vmem:[#allocation3] sm:$0x3f] %v11
    %13 = vst [vmem:[#allocation3 + $0x8] sm:$0x3f] %v11
    %14 = vst [vmem:[#allocation3 + $0x10] sm:$0x3f] %v11
    %15 = vst [vmem:[#allocation3 + $0x18] sm:$0x3f] %v11
    %16 = vst [vmem:[#allocation3 + $0x20] sm:$0x3f] %v11
    %17 = vst [vmem:[#allocation3 + $0x28] sm:$0x3f] %v11
    %18 = vst [vmem:[#allocation3 + $0x30] sm:$0x3f] %v11
    %19 = vst [vmem:[#allocation3 + $0x38] sm:$0x3f] %v11
    %20 = vst [vmem:[#allocation3 + $0x40] sm:$0x3f] %v11
    %21 = vst [vmem:[#allocation3 + $0x48] sm:$0x3f] %v11
    %22 = vst [vmem:[#allocation3 + $0x50] sm:$0x3f] %v11
    %23 = vst [vmem:[#allocation3 + $0x58] sm:$0x3f] %v11
    %24 = vst [vmem:[#allocation3 + $0x60] sm:$0x3f] %v11
    %25 = vst [vmem:[#allocation3 + $0x68] sm:$0x3f] %v11
    %26 = vst [vmem:[#allocation3 + $0x70] sm:$0x3f] %v11
    %27 = vst [vmem:[#allocation3 + $0x78] sm:$0x3f] %v11
    %28 = vst [vmem:[#allocation3 + $0x80] sm:$0x3f] %v11
    %29 = vst [vmem:[#allocation3 + $0x88] sm:$0x3f] %v11
    %30 = vst [vmem:[#allocation3 + $0x90] sm:$0x3f] %v11
    %31 = vst [vmem:[#allocation3 + $0x98] sm:$0x3f] %v11
    %32 = vst [vmem:[#allocation3 + $0xa0] sm:$0x3f] %v11
    %vm33 = vcmask 128000
    %34 = vst.msk [vmem:[#allocation3 + $0xa8] sm:$0x3f] %vm33, %v11
    // Predicated region
    $region6: #{tpu_custom_call.1} parent=1 // pred_check
      _
    $region7: #{tpu_custom_call.1} parent=1 // pred_check_branch
      %36 = sbr.rel (0) target = $region9
    $region8: #{tpu_custom_call.1} parent=1 // pred_region
      %38 = vsyncadd [#allocation4], 0
      %s40 = sshll.u32 [#allocation3], 4
      %s41 = int_to_ptr.vmem [resolvable:$true] %s40
      %s42 = sshll.u32 %s1, 4
      %s43 = int_to_ptr.hbm [resolvable:$true] %s42
      %45 = dma.vmem_to_hbm [thread:$0]  %s41, 2816, %s43, [#allocation4]
    $region9: #{tpu_custom_call.1} parent=1 // pred_fallthru
      _
    // Predicated region
    $region10: #{tpu_custom_call.1} parent=1 // pred_check
      _
    $region11: #{tpu_custom_call.1} parent=1 // pred_check_branch
      %47 = sbr.rel (0) target = $region13
    $region12: #{tpu_custom_call.1} parent=1 // pred_region
      %49 = dma.done [#allocation4], 2816
    $region13: #{tpu_custom_call.1} parent=1 // pred_fallthru
      _
    %50 = vsyncpa [#allocation4], 1

</llo_original>
